<compile_context>
chip_gen: v5e
topology: v5e:2x2
jax: 0.10.0
libtpu: 0.0.40
codegen_flags: <defaults>
</compile_context>

<pallas_src>
import functools

import jax
import jax.numpy as jnp
from jax.experimental import pallas as pl
from jax.experimental.pallas import tpu as pltpu


def _mlp_kernel(x_ref, w1_ref, b1_ref, w2_ref, b2_ref, w3_ref, b3_ref, o_ref):
    x = x_ref[...]                      # (in_size, tile_n)   lane-dense in N
    in_size = x.shape[0]
    w1 = w1_ref[...]                    # (hidden, in_size)
    b1 = b1_ref[...]                    # (hidden, 1)

    # Layer 0: Linear + ReLU.  K = in_size is tiny for INRs (2/3 coords), so a
    # handful of VPU broadcast-FMAs beats pushing a K=2 matmul through the MXU.
    if in_size <= 8:
        h = b1 + w1[:, 0:1] * x[0:1, :]             # (hidden, tile_n)
        for c in range(1, in_size):                  # static unroll
            h = h + w1[:, c:c + 1] * x[c:c + 1, :]
    else:
        h = jnp.dot(w1, x, preferred_element_type=jnp.float32) + b1
    h = jnp.maximum(h, 0.0)

    # Layer 1: Linear + ReLU (MXU, f32 accumulation).
    h = jnp.dot(w2_ref[...], h, preferred_element_type=jnp.float32) + b2_ref[...]
    h = jnp.maximum(h, 0.0)

    # Final Linear (no activation).  Output stays lane-dense: (out_size, tile_n).
    y = jnp.dot(w3_ref[...], h, preferred_element_type=jnp.float32) + b3_ref[...]
    o_ref[...] = y.astype(o_ref.dtype)


@functools.partial(jax.jit, static_argnames=("tile_n",))
def relu_mlp_pallas(x, params, *, tile_n=1024):
    """x: (N, in_size) f32.  params: nn.Linear-layout weights (out,in), biases (out,1).

    Returns (N, out_size).  Internally runs channels-first with N on the lane axis.
    """
    n, in_size = x.shape
    w1, b1 = params["w1"], params["b1"]
    w2, b2 = params["w2"], params["b2"]
    w3, b3 = params["w3"], params["b3"]
    hidden = w1.shape[0]
    out_size = w3.shape[0]

    # Channels-first view: (in_size, N) so the big axis maps to the 128 lanes.
    x_cn = x.T

    # Effective tile: multiple of 128, no larger than the lane-aligned N.
    n_aligned = pl.cdiv(n, 128) * 128
    tile = max(128, min((int(tile_n) // 128) * 128, n_aligned))
    n_pad = pl.cdiv(n, tile) * tile
    if n_pad != n:
        x_cn = jnp.pad(x_cn, ((0, 0), (0, n_pad - n)))   # ragged tail -> zero pad

    grid = (n_pad // tile,)

    # Grid-invariant (weight/bias) blocks: same block index every step.
    inv = lambda shape: pl.BlockSpec(shape, lambda i: (0, 0))

    y_cn = pl.pallas_call(
        _mlp_kernel,
        out_shape=jax.ShapeDtypeStruct((out_size, n_pad), x.dtype),
        grid_spec=pltpu.PrefetchScalarGridSpec(
            num_scalar_prefetch=0,
            grid=grid,
            in_specs=[
                pl.BlockSpec((in_size, tile), lambda i: (0, i)),   # x stream
                inv((hidden, in_size)),                            # w1
                inv((hidden, 1)),                                  # b1
                inv((hidden, hidden)),                             # w2
                inv((hidden, 1)),                                  # b2
                inv((out_size, hidden)),                           # w3
                inv((out_size, 1)),                                # b3
            ],
            out_specs=pl.BlockSpec((out_size, tile), lambda i: (0, i)),
        ),
        compiler_params=pltpu.CompilerParams(
            dimension_semantics=("parallel",),        # megacore sharding (v7x 2 TCs)
            vmem_limit_bytes=32 * 1024 * 1024,        # explicit: portable to v7x 64 MiB VMEM
        ),
    )(x_cn, w1, b1, w2, b2, w3, b3)

    return y_cn[:, :n].T


def init_relu_mlp_params(key, in_size, out_size, hidden_size):
    """nn.Linear-style init; weights kept in PyTorch (fan_out, fan_in) layout,
    biases as (fan_out, 1) so they broadcast along the lane (N) axis."""
    def linear_init(k, fan_in, fan_out):
        kw, kb = jax.random.split(k)
        bound = 1.0 / (fan_in ** 0.5)
        w = jax.random.uniform(kw, (fan_out, fan_in), jnp.float32, -bound, bound)
        b = jax.random.uniform(kb, (fan_out, 1), jnp.float32, -bound, bound)
        return w, b

    k1, k2, k3 = jax.random.split(key, 3)
    w1, b1 = linear_init(k1, in_size, hidden_size)
    w2, b2 = linear_init(k2, hidden_size, hidden_size)
    w3, b3 = linear_init(k3, hidden_size, out_size)
    return {"w1": w1, "b1": b1, "w2": w2, "b2": b2, "w3": w3, "b3": b3}


def relu_mlp_reference(x, params):
    h = jnp.maximum(x @ params["w1"].T + params["b1"][:, 0], 0.0)
    h = jnp.maximum(h @ params["w2"].T + params["b2"][:, 0], 0.0)
    return h @ params["w3"].T + params["b3"][:, 0]


if __name__ == "__main__":
    # INR-like shapes: N coordinate points (deliberately not a multiple of the
    # tile, to exercise ragged-tail padding), 2-D input, 3-D output, hidden=32,
    # num_layers=2 (two ReLU layers + final Linear).
    N, IN_SIZE, OUT_SIZE, HIDDEN = 1000, 2, 3, 32

    key = jax.random.PRNGKey(0)
    kx, kp = jax.random.split(key)
    x = jax.random.normal(kx, (N, IN_SIZE), jnp.float32)
    params = init_relu_mlp_params(kp, IN_SIZE, OUT_SIZE, HIDDEN)

    # tile_n=512 -> padded N=1024, 2 grid steps (keeps both v7x cores busy at this N).
    y = relu_mlp_pallas(x, params, tile_n=512)
    y = jax.block_until_ready(y)

    y_ref = relu_mlp_reference(x, params)
    assert y.shape == (N, OUT_SIZE)
    max_err = jnp.max(jnp.abs(y - y_ref))
    assert jnp.allclose(y, y_ref, atol=1e-4, rtol=1e-4), f"mismatch vs reference (max abs err {max_err})"

    print("KERNEL_OK")
</pallas_src>

<mosaic_0001>
module attributes {stable_mosaic.version = 11 : i64} {
  func.func @_mlp_kernel(%arg0: i32, %arg1: memref<2x512xf32, #tpu.memory_space<vmem>>, %arg2: memref<32x2xf32, #tpu.memory_space<vmem>>, %arg3: memref<32x1xf32, #tpu.memory_space<vmem>>, %arg4: memref<32x32xf32, #tpu.memory_space<vmem>>, %arg5: memref<32x1xf32, #tpu.memory_space<vmem>>, %arg6: memref<3x32xf32, #tpu.memory_space<vmem>>, %arg7: memref<3x1xf32, #tpu.memory_space<vmem>>, %arg8: memref<3x512xf32, #tpu.memory_space<vmem>>) attributes {dimension_semantics = [#tpu.dimension_semantics<parallel>], iteration_bounds = array<i64: 2>, scalar_prefetch = 0 : i64, scratch_operands = 0 : i64, tpu.core_type = #tpu.core_type<tc>, window_params = [{transform_indices = @transform_0, window_bounds = array<i64: 2, 512>}, {pipeline_mode = #tpu.pipeline_mode<synchronous>, transform_indices = @transform_1, window_bounds = array<i64: 32, 2>}, {pipeline_mode = #tpu.pipeline_mode<synchronous>, transform_indices = @transform_2, window_bounds = array<i64: 32, 1>}, {pipeline_mode = #tpu.pipeline_mode<synchronous>, transform_indices = @transform_3, window_bounds = array<i64: 32, 32>}, {pipeline_mode = #tpu.pipeline_mode<synchronous>, transform_indices = @transform_4, window_bounds = array<i64: 32, 1>}, {pipeline_mode = #tpu.pipeline_mode<synchronous>, transform_indices = @transform_5, window_bounds = array<i64: 3, 32>}, {pipeline_mode = #tpu.pipeline_mode<synchronous>, transform_indices = @transform_6, window_bounds = array<i64: 3, 1>}, {transform_indices = @transform_7, window_bounds = array<i64: 3, 512>}]} {
    %c0 = arith.constant 0 : index
    %c0_0 = arith.constant 0 : index
    %0 = vector.load %arg1[%c0, %c0_0] : memref<2x512xf32, #tpu.memory_space<vmem>>, vector<2x512xf32>
    %c0_1 = arith.constant 0 : index
    %c0_2 = arith.constant 0 : index
    %1 = vector.load %arg2[%c0_1, %c0_2] : memref<32x2xf32, #tpu.memory_space<vmem>>, vector<32x2xf32>
    %c0_3 = arith.constant 0 : index
    %c0_4 = arith.constant 0 : index
    %2 = vector.load %arg3[%c0_3, %c0_4] : memref<32x1xf32, #tpu.memory_space<vmem>>, vector<32x1xf32>
    %3 = vector.extract_strided_slice %1 {offsets = [0, 0], sizes = [32, 1], strides = [1, 1]} : vector<32x2xf32> to vector<32x1xf32>
    %4 = vector.extract_strided_slice %0 {offsets = [0, 0], sizes = [1, 512], strides = [1, 1]} : vector<2x512xf32> to vector<1x512xf32>
    %5 = vector.broadcast %3 : vector<32x1xf32> to vector<32x512xf32>
    %6 = vector.broadcast %4 : vector<1x512xf32> to vector<32x512xf32>
    %7 = arith.mulf %5, %6 : vector<32x512xf32>
    %8 = vector.broadcast %2 : vector<32x1xf32> to vector<32x512xf32>
    %9 = arith.addf %8, %7 : vector<32x512xf32>
    %10 = vector.extract_strided_slice %1 {offsets = [0, 1], sizes = [32, 1], strides = [1, 1]} : vector<32x2xf32> to vector<32x1xf32>
    %11 = vector.extract_strided_slice %0 {offsets = [1, 0], sizes = [1, 512], strides = [1, 1]} : vector<2x512xf32> to vector<1x512xf32>
    %12 = vector.broadcast %10 : vector<32x1xf32> to vector<32x512xf32>
    %13 = vector.broadcast %11 : vector<1x512xf32> to vector<32x512xf32>
    %14 = arith.mulf %12, %13 : vector<32x512xf32>
    %15 = arith.addf %9, %14 : vector<32x512xf32>
    %cst = arith.constant 0.000000e+00 : f32
    %16 = vector.broadcast %cst : f32 to vector<32x512xf32>
    %17 = arith.maximumf %15, %16 : vector<32x512xf32>
    %c0_5 = arith.constant 0 : index
    %c0_6 = arith.constant 0 : index
    %18 = vector.load %arg4[%c0_5, %c0_6] : memref<32x32xf32, #tpu.memory_space<vmem>>, vector<32x32xf32>
    %cst_7 = arith.constant dense<0.000000e+00> : vector<32x512xf32>
    %19 = tpu.matmul %18, %17, %cst_7 {dimension_numbers = #tpu.dot_dimension_numbers<[1], [0], [0], [1], [0, 0, 1, 1], [], []>} : vector<32x32xf32>, vector<32x512xf32>, vector<32x512xf32> -> vector<32x512xf32>
    %c0_8 = arith.constant 0 : index
    %c0_9 = arith.constant 0 : index
    %20 = vector.load %arg5[%c0_8, %c0_9] : memref<32x1xf32, #tpu.memory_space<vmem>>, vector<32x1xf32>
    %21 = vector.broadcast %20 : vector<32x1xf32> to vector<32x512xf32>
    %22 = arith.addf %19, %21 : vector<32x512xf32>
    %cst_10 = arith.constant 0.000000e+00 : f32
    %23 = vector.broadcast %cst_10 : f32 to vector<32x512xf32>
    %24 = arith.maximumf %22, %23 : vector<32x512xf32>
    %c0_11 = arith.constant 0 : index
    %c0_12 = arith.constant 0 : index
    %25 = vector.load %arg6[%c0_11, %c0_12] : memref<3x32xf32, #tpu.memory_space<vmem>>, vector<3x32xf32>
    %cst_13 = arith.constant dense<0.000000e+00> : vector<3x512xf32>
    %26 = tpu.matmul %25, %24, %cst_13 {dimension_numbers = #tpu.dot_dimension_numbers<[1], [0], [0], [1], [0, 0, 1, 1], [], []>} : vector<3x32xf32>, vector<32x512xf32>, vector<3x512xf32> -> vector<3x512xf32>
    %c0_14 = arith.constant 0 : index
    %c0_15 = arith.constant 0 : index
    %27 = vector.load %arg7[%c0_14, %c0_15] : memref<3x1xf32, #tpu.memory_space<vmem>>, vector<3x1xf32>
    %28 = vector.broadcast %27 : vector<3x1xf32> to vector<3x512xf32>
    %29 = arith.addf %26, %28 : vector<3x512xf32>
    %c0_16 = arith.constant 0 : index
    %c0_17 = arith.constant 0 : index
    %30 = vector.load %arg8[%c0_16, %c0_17] : memref<3x512xf32, #tpu.memory_space<vmem>>, vector<3x512xf32>
    tpu.vector_store %arg8[%c0_16, %c0_17], %29 {strides = array<i32>} : memref<3x512xf32, #tpu.memory_space<vmem>>, vector<3x512xf32>,
    return
  }
  func.func @transform_0(%arg0: i32) -> (i32, i32) {
    %c0_i32 = arith.constant 0 : i32
    %c0_i32_0 = arith.constant 0 : i32
    return %c0_i32, %arg0 : i32, i32
  }
  func.func @transform_1(%arg0: i32) -> (i32, i32) {
    %c0_i32 = arith.constant 0 : i32
    %c0_i32_0 = arith.constant 0 : i32
    %c0_i32_1 = arith.constant 0 : i32
    return %c0_i32, %c0_i32_0 : i32, i32
  }
  func.func @transform_2(%arg0: i32) -> (i32, i32) {
    %c0_i32 = arith.constant 0 : i32
    %c0_i32_0 = arith.constant 0 : i32
    %c0_i32_1 = arith.constant 0 : i32
    return %c0_i32, %c0_i32_0 : i32, i32
  }
  func.func @transform_3(%arg0: i32) -> (i32, i32) {
    %c0_i32 = arith.constant 0 : i32
    %c0_i32_0 = arith.constant 0 : i32
    %c0_i32_1 = arith.constant 0 : i32
    return %c0_i32, %c0_i32_0 : i32, i32
  }
  func.func @transform_4(%arg0: i32) -> (i32, i32) {
    %c0_i32 = arith.constant 0 : i32
    %c0_i32_0 = arith.constant 0 : i32
    %c0_i32_1 = arith.constant 0 : i32
    return %c0_i32, %c0_i32_0 : i32, i32
  }
  func.func @transform_5(%arg0: i32) -> (i32, i32) {
    %c0_i32 = arith.constant 0 : i32
    %c0_i32_0 = arith.constant 0 : i32
    %c0_i32_1 = arith.constant 0 : i32
    return %c0_i32, %c0_i32_0 : i32, i32
  }
  func.func @transform_6(%arg0: i32) -> (i32, i32) {
    %c0_i32 = arith.constant 0 : i32
    %c0_i32_0 = arith.constant 0 : i32
    %c0_i32_1 = arith.constant 0 : i32
    return %c0_i32, %c0_i32_0 : i32, i32
  }
  func.func @transform_7(%arg0: i32) -> (i32, i32) {
    %c0_i32 = arith.constant 0 : i32
    %c0_i32_0 = arith.constant 0 : i32
    return %c0_i32, %arg0 : i32, i32
  }
}

</mosaic_0001>

<llo_original>
// kernel: relu_mlp_pallas.1
$region0: #{relu_mlp_pallas.1}
  #allocation0 [shape = 'u32[]', space=smem, size = 0x4, offset = 0x4, fixed_abs, tag = 'smem constant byte address 0x4 - core index']
  #allocation1 [shape = 'u32[72,128]{1,0:T(1,128)}', space=vmem, size = 0x9000, scoped, tag = 'internal scratch']
  %s0 = inlined_call_operand.vmem [shape: f32[2,1024], index: 0, kind: input, shape index: {}]
  %s1 = inlined_call_operand.vmem [shape: f32[32,2], index: 1, kind: input, shape index: {}]
  %s2 = inlined_call_operand.vmem [shape: f32[32,1], index: 2, kind: input, shape index: {}]
  %s3 = inlined_call_operand.vmem [shape: f32[32,32], index: 3, kind: input, shape index: {}]
  %s4 = inlined_call_operand.vmem [shape: f32[32,1], index: 4, kind: input, shape index: {}]
  %s5 = inlined_call_operand.vmem [shape: f32[3,32], index: 5, kind: input, shape index: {}]
  %s6 = inlined_call_operand.vmem [shape: f32[3,1], index: 6, kind: input, shape index: {}]
  %s7 = inlined_call_operand.vmem [shape: f32[3,1024], index: 7, kind: output, shape index: {}]
  %s8 = sld [smem:[#allocation0]]
  $region61: #{relu_mlp_pallas.1} parent=0
    _
  %s10 = ssub.s32 1, %s8
  %s11 = scalar_select 0, %s10, %s8
  loop: start=0, step=1, limit=4
  $region2: #{relu_mlp_pallas.1} parent=0 // loop_pre_header
    _
  $region3: #{relu_mlp_pallas.1} parent=0 // loop_header
    %s13 = sphi 0, %s17
    %p14 = scmp.ge.s32.totalorder %s13, 4
    %s23 = sphi 0, %s25
    %s26 = sphi 0, %s23
    %s27 = sphi 0, %s26
    %s43 = sphi 0, %s27
    %s47 = sphi 0, %s47
    %s49 = sphi 0, %s47
    %s50 = sphi 0, %s49
    %s64 = sphi 0, %s50
    %s68 = sphi 0, %s68
    %s70 = sphi 0, %s68
    %s71 = sphi 0, %s70
    %s85 = sphi 0, %s71
    %s89 = sphi 0, %s89
    %s91 = sphi 0, %s89
    %s92 = sphi 0, %s91
    %s106 = sphi 0, %s92
    %s110 = sphi 0, %s110
    %s112 = sphi 0, %s110
    %s113 = sphi 0, %s112
    %s127 = sphi 0, %s113
    %s131 = sphi 0, %s131
    %s133 = sphi 0, %s131
    %s134 = sphi 0, %s133
    %s148 = sphi 0, %s134
    %s152 = sphi 0, %s152
    %s154 = sphi 0, %s152
    %s155 = sphi 0, %s154
    %s169 = sphi 0, %s155
    %s175 = sphi 0, %s177
    %s178 = sphi 0, %s175
    %s179 = sphi 0, %s178
    %s195 = sphi 0, %s179
  $region4: #{relu_mlp_pallas.1} parent=0 // loop_header_branch
    %16 = sbr.rel (%p14) target = $region8
  $region5: #{relu_mlp_pallas.1} parent=0 // loop_body
    %s18 = ssub.s32 %s13, 1
    %s19 = ssub.s32 %s13, 2
    %s20 = sadd.s32 %s13, 1
    %s21 = ssub.s32 %s13, %s20
    %p22 = scmp.eq.s32.totalorder %s21, 0
    %s24 = sadd.s32 %s23, 1
    %s25 = scalar_select %p22, %s23, %s24
    %p28 = pneg %p22
    %p29 = scmp.eq.s32.totalorder %s13, 1
    %p30 = por %p28, %p29
    %p31 = scmp.ne.s32.totalorder %s23, %s26
    %p32 = scmp.eq.s32.totalorder %s13, 0
    %p33 = por %p31, %p32
    %p34 = scmp.ne.s32.totalorder %s23, %s26
    %p35 = scmp.eq.s32.totalorder %s18, 1
    %p36 = por %p34, %p35
    %p37 = scmp.ne.s32.totalorder %s26, %s27
    %p38 = scmp.eq.s32.totalorder %s18, 0
    %p39 = por %p37, %p38
    %p40 = scmp.ne.s32.totalorder %s26, %s27
    %p41 = scmp.eq.s32.totalorder %s19, 1
    %p42 = por %p40, %p41
    %p44 = scmp.ne.s32.totalorder %s27, %s43
    %p45 = scmp.eq.s32.totalorder %s19, 0
    %p46 = por %p44, %p45
    %s48 = sadd.s32 %s47, 1
    %p51 = scmp.eq.s32.totalorder %s13, 1
    %p52 = scmp.ne.s32.totalorder %s47, %s49
    %p53 = scmp.eq.s32.totalorder %s13, 0
    %p54 = por %p52, %p53
    %p55 = scmp.ne.s32.totalorder %s47, %s49
    %p56 = scmp.eq.s32.totalorder %s18, 1
    %p57 = por %p55, %p56
    %p58 = scmp.ne.s32.totalorder %s49, %s50
    %p59 = scmp.eq.s32.totalorder %s18, 0
    %p60 = por %p58, %p59
    %p61 = scmp.ne.s32.totalorder %s49, %s50
    %p62 = scmp.eq.s32.totalorder %s19, 1
    %p63 = por %p61, %p62
    %p65 = scmp.ne.s32.totalorder %s50, %s64
    %p66 = scmp.eq.s32.totalorder %s19, 0
    %p67 = por %p65, %p66
    %s69 = sadd.s32 %s68, 1
    %p72 = scmp.eq.s32.totalorder %s13, 1
    %p73 = scmp.ne.s32.totalorder %s68, %s70
    %p74 = scmp.eq.s32.totalorder %s13, 0
    %p75 = por %p73, %p74
    %p76 = scmp.ne.s32.totalorder %s68, %s70
    %p77 = scmp.eq.s32.totalorder %s18, 1
    %p78 = por %p76, %p77
    %p79 = scmp.ne.s32.totalorder %s70, %s71
    %p80 = scmp.eq.s32.totalorder %s18, 0
    %p81 = por %p79, %p80
    %p82 = scmp.ne.s32.totalorder %s70, %s71
    %p83 = scmp.eq.s32.totalorder %s19, 1
    %p84 = por %p82, %p83
    %p86 = scmp.ne.s32.totalorder %s71, %s85
    %p87 = scmp.eq.s32.totalorder %s19, 0
    %p88 = por %p86, %p87
    %s90 = sadd.s32 %s89, 1
    %p93 = scmp.eq.s32.totalorder %s13, 1
    %p94 = scmp.ne.s32.totalorder %s89, %s91
    %p95 = scmp.eq.s32.totalorder %s13, 0
    %p96 = por %p94, %p95
    %p97 = scmp.ne.s32.totalorder %s89, %s91
    %p98 = scmp.eq.s32.totalorder %s18, 1
    %p99 = por %p97, %p98
    %p100 = scmp.ne.s32.totalorder %s91, %s92
    %p101 = scmp.eq.s32.totalorder %s18, 0
    %p102 = por %p100, %p101
    %p103 = scmp.ne.s32.totalorder %s91, %s92
    %p104 = scmp.eq.s32.totalorder %s19, 1
    %p105 = por %p103, %p104
    %p107 = scmp.ne.s32.totalorder %s92, %s106
    %p108 = scmp.eq.s32.totalorder %s19, 0
    %p109 = por %p107, %p108
    %s111 = sadd.s32 %s110, 1
    %p114 = scmp.eq.s32.totalorder %s13, 1
    %p115 = scmp.ne.s32.totalorder %s110, %s112
    %p116 = scmp.eq.s32.totalorder %s13, 0
    %p117 = por %p115, %p116
    %p118 = scmp.ne.s32.totalorder %s110, %s112
    %p119 = scmp.eq.s32.totalorder %s18, 1
    %p120 = por %p118, %p119
    %p121 = scmp.ne.s32.totalorder %s112, %s113
    %p122 = scmp.eq.s32.totalorder %s18, 0
    %p123 = por %p121, %p122
    %p124 = scmp.ne.s32.totalorder %s112, %s113
    %p125 = scmp.eq.s32.totalorder %s19, 1
    %p126 = por %p124, %p125
    %p128 = scmp.ne.s32.totalorder %s113, %s127
    %p129 = scmp.eq.s32.totalorder %s19, 0
    %p130 = por %p128, %p129
    %s132 = sadd.s32 %s131, 1
    %p135 = scmp.eq.s32.totalorder %s13, 1
    %p136 = scmp.ne.s32.totalorder %s131, %s133
    %p137 = scmp.eq.s32.totalorder %s13, 0
    %p138 = por %p136, %p137
    %p139 = scmp.ne.s32.totalorder %s131, %s133
    %p140 = scmp.eq.s32.totalorder %s18, 1
    %p141 = por %p139, %p140
    %p142 = scmp.ne.s32.totalorder %s133, %s134
    %p143 = scmp.eq.s32.totalorder %s18, 0
    %p144 = por %p142, %p143
    %p145 = scmp.ne.s32.totalorder %s133, %s134
    %p146 = scmp.eq.s32.totalorder %s19, 1
    %p147 = por %p145, %p146
    %p149 = scmp.ne.s32.totalorder %s134, %s148
    %p150 = scmp.eq.s32.totalorder %s19, 0
    %p151 = por %p149, %p150
    %s153 = sadd.s32 %s152, 1
    %p156 = scmp.eq.s32.totalorder %s13, 1
    %p157 = scmp.ne.s32.totalorder %s152, %s154
    %p158 = scmp.eq.s32.totalorder %s13, 0
    %p159 = por %p157, %p158
    %p160 = scmp.ne.s32.totalorder %s152, %s154
    %p161 = scmp.eq.s32.totalorder %s18, 1
    %p162 = por %p160, %p161
    %p163 = scmp.ne.s32.totalorder %s154, %s155
    %p164 = scmp.eq.s32.totalorder %s18, 0
    %p165 = por %p163, %p164
    %p166 = scmp.ne.s32.totalorder %s154, %s155
    %p167 = scmp.eq.s32.totalorder %s19, 1
    %p168 = por %p166, %p167
    %p170 = scmp.ne.s32.totalorder %s155, %s169
    %p171 = scmp.eq.s32.totalorder %s19, 0
    %p172 = por %p170, %p171
    %s173 = ssub.s32 %s13, %s20
    %p174 = scmp.eq.s32.totalorder %s173, 0
    %s176 = sadd.s32 %s175, 1
    %s177 = scalar_select %p174, %s175, %s176
    %p180 = pneg %p174
    %p181 = scmp.eq.s32.totalorder %s13, 1
    %p182 = por %p180, %p181
    %p183 = scmp.ne.s32.totalorder %s175, %s178
    %p184 = scmp.eq.s32.totalorder %s13, 0
    %p185 = por %p183, %p184
    %p186 = scmp.ne.s32.totalorder %s175, %s178
    %p187 = scmp.eq.s32.totalorder %s18, 1
    %p188 = por %p186, %p187
    %p189 = scmp.ne.s32.totalorder %s178, %s179
    %p190 = scmp.eq.s32.totalorder %s18, 0
    %p191 = por %p189, %p190
    %p192 = scmp.ne.s32.totalorder %s178, %s179
    %p193 = scmp.eq.s32.totalorder %s19, 1
    %p194 = por %p192, %p193
    %p196 = scmp.ne.s32.totalorder %s179, %s195
    %p197 = scmp.eq.s32.totalorder %s19, 0
    %p198 = por %p196, %p197
    %p199 = scmp.le.s32.totalorder 1, %s13
    %p200 = scmp.lt.s32.totalorder %s13, 3
    %p201 = pnand %p199, %p200
    %p202 = pneg %p201
    // Predicated region
    $region9: #{relu_mlp_pallas.1} parent=5 // pred_check
      _
    $region10: #{relu_mlp_pallas.1} parent=5 // pred_check_branch
      %204 = sbr.rel (%p201) target = $region12
    $region11: #{relu_mlp_pallas.1} parent=5 // pred_region
      %s205 = ssub.s32 %s13, 1
      // Predicated region
      $region13: #{relu_mlp_pallas.1} parent=11 // pred_check
        %p206 = pneg %p60
      $region14: #{relu_mlp_pallas.1} parent=11 // pred_check_branch
        %208 = sbr.rel (%p206) target = $region16
      $region15: #{relu_mlp_pallas.1} parent=11 // pred_region
        _
      $region16: #{relu_mlp_pallas.1} parent=11 // pred_fallthru
        _
      // Predicated region
      $region17: #{relu_mlp_pallas.1} parent=11 // pred_check
        %p209 = pneg %p81
      $region18: #{relu_mlp_pallas.1} parent=11 // pred_check_branch
        %211 = sbr.rel (%p209) target = $region20
      $region19: #{relu_mlp_pallas.1} parent=11 // pred_region
        _
      $region20: #{relu_mlp_pallas.1} parent=11 // pred_fallthru
        _
      // Predicated region
      $region21: #{relu_mlp_pallas.1} parent=11 // pred_check
        %p212 = pneg %p102
      $region22: #{relu_mlp_pallas.1} parent=11 // pred_check_branch
        %214 = sbr.rel (%p212) target = $region24
      $region23: #{relu_mlp_pallas.1} parent=11 // pred_region
        _
      $region24: #{relu_mlp_pallas.1} parent=11 // pred_fallthru
        _
      // Predicated region
      $region25: #{relu_mlp_pallas.1} parent=11 // pred_check
        %p215 = pneg %p123
      $region26: #{relu_mlp_pallas.1} parent=11 // pred_check_branch
        %217 = sbr.rel (%p215) target = $region28
      $region27: #{relu_mlp_pallas.1} parent=11 // pred_region
        _
      $region28: #{relu_mlp_pallas.1} parent=11 // pred_fallthru
        _
      // Predicated region
      $region29: #{relu_mlp_pallas.1} parent=11 // pred_check
        %p218 = pneg %p144
      $region30: #{relu_mlp_pallas.1} parent=11 // pred_check_branch
        %220 = sbr.rel (%p218) target = $region32
      $region31: #{relu_mlp_pallas.1} parent=11 // pred_region
        _
      $region32: #{relu_mlp_pallas.1} parent=11 // pred_fallthru
        _
      // Predicated region
      $region33: #{relu_mlp_pallas.1} parent=11 // pred_check
        %p221 = pneg %p165
      $region34: #{relu_mlp_pallas.1} parent=11 // pred_check_branch
        %223 = sbr.rel (%p221) target = $region36
      $region35: #{relu_mlp_pallas.1} parent=11 // pred_region
        _
      $region36: #{relu_mlp_pallas.1} parent=11 // pred_fallthru
        _
    $region12: #{relu_mlp_pallas.1} parent=5 // pred_fallthru
      _
    %p224 = scmp.lt.s32.totalorder %s13, 2
    // Predicated region
    $region37: #{relu_mlp_pallas.1} parent=5 // pred_check
      %p225 = pneg %p224
    $region38: #{relu_mlp_pallas.1} parent=5 // pred_check_branch
      %227 = sbr.rel (%p225) target = $region40
    $region39: #{relu_mlp_pallas.1} parent=5 // pred_region
      // Predicated region
      $region41: #{relu_mlp_pallas.1} parent=39 // pred_check
        %p228 = pneg %p33
      $region42: #{relu_mlp_pallas.1} parent=39 // pred_check_branch
        %230 = sbr.rel (%p228) target = $region44
      $region43: #{relu_mlp_pallas.1} parent=39 // pred_region
        %s231 = smul.u32 4, %s13
        %p232 = scmp.lt.s32.totalorder %s231, 7
        %s233 = scalar_select %p232, %s231, 7
        %s234 = smul.addr %s233, 2
        %s235 = scalar_lea.vmem %s0, %s234
        %s236 = smul.u32 4, %s13
      $region44: #{relu_mlp_pallas.1} parent=39 // pred_fallthru
        _
    $region40: #{relu_mlp_pallas.1} parent=5 // pred_fallthru
      _
    %p237 = scmp.le.s32.totalorder 1, %s13
    %p238 = scmp.lt.s32.totalorder %s13, 3
    %p239 = pnand %p237, %p238
    %p240 = pneg %p239
    // Predicated region
    $region45: #{relu_mlp_pallas.1} parent=5 // pred_check
      _
    $region46: #{relu_mlp_pallas.1} parent=5 // pred_check_branch
      %242 = sbr.rel (%p239) target = $region48
    $region47: #{relu_mlp_pallas.1} parent=5 // pred_region
      %s243 = ssub.s32 %s13, 1
      %s244 = smul.u32 4, %s18
      %p245 = scmp.lt.s32.totalorder %s244, 7
      %s246 = scalar_select %p245, %s244, 7
      %s247 = smul.addr %s246, 2
      %s248 = scalar_lea.vmem %s0, %s247
      %p249 = pneg %p39
      %p250 = pneg %p36
      %p251 = pneg %p60
      %p252 = pneg %p57
      %p253 = pneg %p81
      %p254 = pneg %p78
      %p255 = pneg %p102
      %p256 = pneg %p99
      %p257 = pneg %p123
      %p258 = pneg %p120
      %p259 = pneg %p144
      %p260 = pneg %p141
      %p261 = pneg %p165
      %p262 = pneg %p162
      %p263 = pneg %p191
      %p264 = pneg %p188
      %s265 = smul.u32 4, %s18
      %p266 = scmp.lt.s32.totalorder %s265, 7
      %s267 = scalar_select %p266, %s265, 7
      %s268 = smul.addr %s267, 4
      %s269 = scalar_lea.vmem %s7, %s268
      %s270 = smul.u32 4, %s18
      %p271 = scmp.lt.s32.totalorder %s270, 7
      %s272 = scalar_select %p271, %s270, 7
      %s273 = smul.addr %s272, 2
      %s274 = scalar_lea.vmem %s0, %s273
      %s275 = smul.u32 4, %s18
      %s276 = smul.u32 4, %s18
      %p277 = scmp.lt.s32.totalorder %s276, 7
      %s278 = scalar_select %p277, %s276, 7
      %s279 = smul.addr %s278, 4
      %s280 = scalar_lea.vmem %s7, %s279
      %s281 = smul.u32 4, %s18
      %v282 = vld [vmem:[%s274] sm:$0xff]
      %v283 = vld [vmem:[%s1] sm:$0xff]
      %v284 = vld [vmem:[%s1 + $0x8] sm:$0xff]
      %v285 = vld [vmem:[%s1 + $0x10] sm:$0xff]
      %v286 = vld [vmem:[%s1 + $0x18] sm:$0xff]
      %v287 = vld [vmem:[%s2] sm:$0xff]
      %v288 = vld [vmem:[%s2 + $0x8] sm:$0xff]
      %v289 = vld [vmem:[%s2 + $0x10] sm:$0xff]
      %v290 = vld [vmem:[%s2 + $0x18] sm:$0xff]
      %292 = vset.pattern.permute.xlu0 0
      %293 = vperm.xlu0 %292, %v283
      %v294 = vpop.permute.xlu0 %293
      %297 = vset.pattern.permute.xlu0 0
      %298 = vperm.xlu0 %297, %v284
      %v299 = vpop.permute.xlu0 %298
      %302 = vset.pattern.permute.xlu0 0
      %303 = vperm.xlu0 %302, %v285
      %v304 = vpop.permute.xlu0 %303
      %307 = vset.pattern.permute.xlu0 0
      %308 = vperm.xlu0 %307, %v286
      %v309 = vpop.permute.xlu0 %308
      %v312 = vperm.slane %v282, 0
      %v313 = vperm.slane %v282, 2
      %v314 = vperm.slane %v282, 4
      %v315 = vperm.slane %v282, 6
      %v320 = vperm.slane %v312, 0
      %v321 = vperm.slane %v313, 0
      %v322 = vperm.slane %v314, 0
      %v323 = vperm.slane %v315, 0
      %v324 = vmul.f32 %v294, %v320
      %v325 = vmul.f32 %v294, %v321
      %v326 = vmul.f32 %v294, %v322
      %v327 = vmul.f32 %v294, %v323
      %v328 = vmul.f32 %v299, %v320
      %v329 = vmul.f32 %v299, %v321
      %v330 = vmul.f32 %v299, %v322
      %v331 = vmul.f32 %v299, %v323
      %v332 = vmul.f32 %v304, %v320
      %v333 = vmul.f32 %v304, %v321
      %v334 = vmul.f32 %v304, %v322
      %v335 = vmul.f32 %v304, %v323
      %v336 = vmul.f32 %v309, %v320
      %v337 = vmul.f32 %v309, %v321
      %v338 = vmul.f32 %v309, %v322
      %v339 = vmul.f32 %v309, %v323
      %341 = vset.pattern.permute.xlu0 0
      %342 = vperm.xlu0 %341, %v287
      %v343 = vpop.permute.xlu0 %342
      %346 = vset.pattern.permute.xlu0 0
      %347 = vperm.xlu0 %346, %v288
      %v348 = vpop.permute.xlu0 %347
      %351 = vset.pattern.permute.xlu0 0
      %352 = vperm.xlu0 %351, %v289
      %v353 = vpop.permute.xlu0 %352
      %356 = vset.pattern.permute.xlu0 0
      %357 = vperm.xlu0 %356, %v290
      %v358 = vpop.permute.xlu0 %357
      %v360 = vadd.f32 %v343, %v324
      %v361 = vadd.f32 %v343, %v325
      %v362 = vadd.f32 %v343, %v326
      %v363 = vadd.f32 %v343, %v327
      %v364 = vadd.f32 %v348, %v328
      %v365 = vadd.f32 %v348, %v329
      %v366 = vadd.f32 %v348, %v330
      %v367 = vadd.f32 %v348, %v331
      %v368 = vadd.f32 %v353, %v332
      %v369 = vadd.f32 %v353, %v333
      %v370 = vadd.f32 %v353, %v334
      %v371 = vadd.f32 %v353, %v335
      %v372 = vadd.f32 %v358, %v336
      %v373 = vadd.f32 %v358, %v337
      %v374 = vadd.f32 %v358, %v338
      %v375 = vadd.f32 %v358, %v339
      %376 = vset.pattern.permute.xlu0 1
      %377 = vperm.xlu0 %376, %v283
      %v378 = vpop.permute.xlu0 %377
      %380 = vset.pattern.permute.xlu0 1
      %381 = vperm.xlu0 %380, %v284
      %v382 = vpop.permute.xlu0 %381
      %384 = vset.pattern.permute.xlu0 1
      %385 = vperm.xlu0 %384, %v285
      %v386 = vpop.permute.xlu0 %385
      %388 = vset.pattern.permute.xlu0 1
      %389 = vperm.xlu0 %388, %v286
      %v390 = vpop.permute.xlu0 %389
      %v392 = vperm.slane %v282, 1
      %v393 = vperm.slane %v282, 3
      %v394 = vperm.slane %v282, 5
      %v395 = vperm.slane %v282, 7
      %v400 = vperm.slane %v392, 1
      %v401 = vperm.slane %v393, 1
      %v402 = vperm.slane %v394, 1
      %v403 = vperm.slane %v395, 1
      %v404 = vmul.f32 %v378, %v400
      %v405 = vmul.f32 %v378, %v401
      %v406 = vmul.f32 %v378, %v402
      %v407 = vmul.f32 %v378, %v403
      %v408 = vmul.f32 %v382, %v400
      %v409 = vmul.f32 %v382, %v401
      %v410 = vmul.f32 %v382, %v402
      %v411 = vmul.f32 %v382, %v403
      %v412 = vmul.f32 %v386, %v400
      %v413 = vmul.f32 %v386, %v401
      %v414 = vmul.f32 %v386, %v402
      %v415 = vmul.f32 %v386, %v403
      %v416 = vmul.f32 %v390, %v400
      %v417 = vmul.f32 %v390, %v401
      %v418 = vmul.f32 %v390, %v402
      %v419 = vmul.f32 %v390, %v403
      %v420 = vadd.f32 %v360, %v404
      %v421 = vadd.f32 %v361, %v405
      %v422 = vadd.f32 %v362, %v406
      %v423 = vadd.f32 %v363, %v407
      %v424 = vadd.f32 %v364, %v408
      %v425 = vadd.f32 %v365, %v409
      %v426 = vadd.f32 %v366, %v410
      %v427 = vadd.f32 %v367, %v411
      %v428 = vadd.f32 %v368, %v412
      %v429 = vadd.f32 %v369, %v413
      %v430 = vadd.f32 %v370, %v414
      %v431 = vadd.f32 %v371, %v415
      %v432 = vadd.f32 %v372, %v416
      %v433 = vadd.f32 %v373, %v417
      %v434 = vadd.f32 %v374, %v418
      %v435 = vadd.f32 %v375, %v419
      %v436 = vmax.f32 %v420, 0.0
      %v437 = vmax.f32 %v421, 0.0
      %v438 = vmax.f32 %v422, 0.0
      %v439 = vmax.f32 %v423, 0.0
      %v440 = vmax.f32 %v424, 0.0
      %v441 = vmax.f32 %v425, 0.0
      %v442 = vmax.f32 %v426, 0.0
      %v443 = vmax.f32 %v427, 0.0
      %v444 = vmax.f32 %v428, 0.0
      %v445 = vmax.f32 %v429, 0.0
      %v446 = vmax.f32 %v430, 0.0
      %v447 = vmax.f32 %v431, 0.0
      %v448 = vmax.f32 %v432, 0.0
      %v449 = vmax.f32 %v433, 0.0
      %v450 = vmax.f32 %v434, 0.0
      %v451 = vmax.f32 %v435, 0.0
      %v452 = vld [vmem:[%s3] sm:$0xff]
      %v453 = vld [vmem:[%s3 + $0x8] sm:$0xff]
      %v454 = vld [vmem:[%s3 + $0x10] sm:$0xff]
      %v455 = vld [vmem:[%s3 + $0x18] sm:$0xff]
      %v456 = vld [vmem:[%s4] sm:$0xff]
      %v457 = vld [vmem:[%s4 + $0x8] sm:$0xff]
      %v458 = vld [vmem:[%s4 + $0x10] sm:$0xff]
      %v459 = vld [vmem:[%s4 + $0x18] sm:$0xff]
      %461 = vset.pattern.permute.xlu0 0
      %462 = vperm.xlu0 %461, %v456
      %v463 = vpop.permute.xlu0 %462
      %466 = vset.pattern.permute.xlu0 0
      %467 = vperm.xlu0 %466, %v457
      %v468 = vpop.permute.xlu0 %467
      %471 = vset.pattern.permute.xlu0 0
      %472 = vperm.xlu0 %471, %v458
      %v473 = vpop.permute.xlu0 %472
      %476 = vset.pattern.permute.xlu0 0
      %477 = vperm.xlu0 %476, %v459
      %v478 = vpop.permute.xlu0 %477
      %vm480 = vcmask 261120
      %v482 = vsel %vm480, %v452, 0
      %v485 = vsel %vm480, %v453, 0
      %v488 = vsel %vm480, %v454, 0
      %v491 = vsel %vm480, %v455, 0
      %493 = vmatpush.msra.mxu0 0.0
      %494 = vmatpush.msra.mxu0 0.0
      %495 = vmatpush.msra.mxu0 0.0
      %496 = vmatpush.msra.mxu0 0.0
      %497 = vmatpush.msra.mxu0 0.0
      %498 = vmatpush.msra.mxu0 0.0
      %499 = vmatpush.msra.mxu0 0.0
      %500 = vmatpush.msra.mxu0 0.0
      %501 = vmatpush.msra.mxu0 0.0
      %502 = vmatpush.msra.mxu0 0.0
      %503 = vmatpush.msra.mxu0 0.0
      %504 = vmatpush.msra.mxu0 0.0
      %505 = vmatpush.msra.mxu0 %v448
      %506 = vmatpush.msra.mxu0 %v444
      %507 = vmatpush.msra.mxu0 %v440
      %508 = vmatpush.msra.mxu0 %v436
      %509 = vmatmul.f32.gmra.mxu0 %v482
      %v510 = vpop.f32.mrf.mxu0
      %v511 = vadd.f32 %v463, %v510
      %512 = vmatmul.f32.gmra.mxu0 %v485
      %v513 = vpop.f32.mrf.mxu0
      %v514 = vadd.f32 %v468, %v513
      %515 = vmatmul.f32.gmra.mxu0 %v488
      %v516 = vpop.f32.mrf.mxu0
      %v517 = vadd.f32 %v473, %v516
      %518 = vmatmul.f32.gmra.mxu0 %v491
      %v519 = vpop.f32.mrf.mxu0
      %v520 = vadd.f32 %v478, %v519
      %521 = vdwg.mxu0
      %522 = vmatpush.msra.mxu0 0.0
      %523 = vmatpush.msra.mxu0 0.0
      %524 = vmatpush.msra.mxu0 0.0
      %525 = vmatpush.msra.mxu0 0.0
      %526 = vmatpush.msra.mxu0 0.0
      %527 = vmatpush.msra.mxu0 0.0
      %528 = vmatpush.msra.mxu0 0.0
      %529 = vmatpush.msra.mxu0 0.0
      %530 = vmatpush.msra.mxu0 0.0
      %531 = vmatpush.msra.mxu0 0.0
      %532 = vmatpush.msra.mxu0 0.0
      %533 = vmatpush.msra.mxu0 0.0
      %534 = vmatpush.msra.mxu0 %v449
      %535 = vmatpush.msra.mxu0 %v445
      %536 = vmatpush.msra.mxu0 %v441
      %537 = vmatpush.msra.mxu0 %v437
      %538 = vmatmul.f32.gmra.mxu0 %v482
      %v539 = vpop.f32.mrf.mxu0
      %v540 = vadd.f32 %v463, %v539
      %541 = vmatmul.f32.gmra.mxu0 %v485
      %v542 = vpop.f32.mrf.mxu0
      %v543 = vadd.f32 %v468, %v542
      %544 = vmatmul.f32.gmra.mxu0 %v488
      %v545 = vpop.f32.mrf.mxu0
      %v546 = vadd.f32 %v473, %v545
      %547 = vmatmul.f32.gmra.mxu0 %v491
      %v548 = vpop.f32.mrf.mxu0
      %v549 = vadd.f32 %v478, %v548
      %550 = vdwg.mxu0
      %551 = vmatpush.msra.mxu0 0.0
      %552 = vmatpush.msra.mxu0 0.0
      %553 = vmatpush.msra.mxu0 0.0
      %554 = vmatpush.msra.mxu0 0.0
      %555 = vmatpush.msra.mxu0 0.0
      %556 = vmatpush.msra.mxu0 0.0
      %557 = vmatpush.msra.mxu0 0.0
      %558 = vmatpush.msra.mxu0 0.0
      %559 = vmatpush.msra.mxu0 0.0
      %560 = vmatpush.msra.mxu0 0.0
      %561 = vmatpush.msra.mxu0 0.0
      %562 = vmatpush.msra.mxu0 0.0
      %563 = vmatpush.msra.mxu0 %v450
      %564 = vmatpush.msra.mxu0 %v446
      %565 = vmatpush.msra.mxu0 %v442
      %566 = vmatpush.msra.mxu0 %v438
      %567 = vmatmul.f32.gmra.mxu0 %v482
      %v568 = vpop.f32.mrf.mxu0
      %v569 = vadd.f32 %v463, %v568
      %570 = vmatmul.f32.gmra.mxu0 %v485
      %v571 = vpop.f32.mrf.mxu0
      %v572 = vadd.f32 %v468, %v571
      %573 = vmatmul.f32.gmra.mxu0 %v488
      %v574 = vpop.f32.mrf.mxu0
      %v575 = vadd.f32 %v473, %v574
      %576 = vmatmul.f32.gmra.mxu0 %v491
      %v577 = vpop.f32.mrf.mxu0
      %v578 = vadd.f32 %v478, %v577
      %579 = vdwg.mxu0
      %580 = vmatpush.msra.mxu0 0.0
      %581 = vmatpush.msra.mxu0 0.0
      %582 = vmatpush.msra.mxu0 0.0
      %583 = vmatpush.msra.mxu0 0.0
      %584 = vmatpush.msra.mxu0 0.0
      %585 = vmatpush.msra.mxu0 0.0
      %586 = vmatpush.msra.mxu0 0.0
      %587 = vmatpush.msra.mxu0 0.0
      %588 = vmatpush.msra.mxu0 0.0
      %589 = vmatpush.msra.mxu0 0.0
      %590 = vmatpush.msra.mxu0 0.0
      %591 = vmatpush.msra.mxu0 0.0
      %592 = vmatpush.msra.mxu0 %v451
      %593 = vmatpush.msra.mxu0 %v447
      %594 = vmatpush.msra.mxu0 %v443
      %595 = vmatpush.msra.mxu0 %v439
      %596 = vmatmul.f32.gmra.mxu0 %v482
      %v597 = vpop.f32.mrf.mxu0
      %v598 = vadd.f32 %v463, %v597
      %599 = vmatmul.f32.gmra.mxu0 %v485
      %v600 = vpop.f32.mrf.mxu0
      %v601 = vadd.f32 %v468, %v600
      %602 = vmatmul.f32.gmra.mxu0 %v488
      %v603 = vpop.f32.mrf.mxu0
      %v604 = vadd.f32 %v473, %v603
      %605 = vmatmul.f32.gmra.mxu0 %v491
      %v606 = vpop.f32.mrf.mxu0
      %v607 = vadd.f32 %v478, %v606
      %608 = vdwg.mxu0
      %v609 = vmax.f32 %v511, 0.0
      %v610 = vmax.f32 %v540, 0.0
      %v611 = vmax.f32 %v569, 0.0
      %v612 = vmax.f32 %v598, 0.0
      %v613 = vmax.f32 %v514, 0.0
      %v614 = vmax.f32 %v543, 0.0
      %v615 = vmax.f32 %v572, 0.0
      %v616 = vmax.f32 %v601, 0.0
      %v617 = vmax.f32 %v517, 0.0
      %v618 = vmax.f32 %v546, 0.0
      %v619 = vmax.f32 %v575, 0.0
      %v620 = vmax.f32 %v604, 0.0
      %v621 = vmax.f32 %v520, 0.0
      %v622 = vmax.f32 %v549, 0.0
      %v623 = vmax.f32 %v578, 0.0
      %v624 = vmax.f32 %v607, 0.0
      %v625 = vld [vmem:[%s5] sm:$0x7]
      %v626 = vld [vmem:[%s6] sm:$0x7]
      %628 = vset.pattern.permute.xlu0 0
      %629 = vperm.xlu0 %628, %v626
      %v630 = vpop.permute.xlu0 %629
      %v633 = vsel %vm480, %v625, 0
      %635 = vmatpush.msra.mxu0 0.0
      %636 = vmatpush.msra.mxu0 0.0
      %637 = vmatpush.msra.mxu0 0.0
      %638 = vmatpush.msra.mxu0 0.0
      %639 = vmatpush.msra.mxu0 0.0
      %640 = vmatpush.msra.mxu0 0.0
      %641 = vmatpush.msra.mxu0 0.0
      %642 = vmatpush.msra.mxu0 0.0
      %643 = vmatpush.msra.mxu0 0.0
      %644 = vmatpush.msra.mxu0 0.0
      %645 = vmatpush.msra.mxu0 0.0
      %646 = vmatpush.msra.mxu0 0.0
      %647 = vmatpush.msra.mxu0 %v621
      %648 = vmatpush.msra.mxu0 %v617
      %649 = vmatpush.msra.mxu0 %v613
      %650 = vmatpush.msra.mxu0 %v609
      %651 = vmatmul.f32.gmra.mxu0 %v633
      %v652 = vpop.f32.mrf.mxu0
      %v653 = vadd.f32 %v630, %v652
      %654 = vdwg.mxu0
      %655 = vmatpush.msra.mxu0 0.0
      %656 = vmatpush.msra.mxu0 0.0
      %657 = vmatpush.msra.mxu0 0.0
      %658 = vmatpush.msra.mxu0 0.0
      %659 = vmatpush.msra.mxu0 0.0
      %660 = vmatpush.msra.mxu0 0.0
      %661 = vmatpush.msra.mxu0 0.0
      %662 = vmatpush.msra.mxu0 0.0
      %663 = vmatpush.msra.mxu0 0.0
      %664 = vmatpush.msra.mxu0 0.0
      %665 = vmatpush.msra.mxu0 0.0
      %666 = vmatpush.msra.mxu0 0.0
      %667 = vmatpush.msra.mxu0 %v622
      %668 = vmatpush.msra.mxu0 %v618
      %669 = vmatpush.msra.mxu0 %v614
      %670 = vmatpush.msra.mxu0 %v610
      %671 = vmatmul.f32.gmra.mxu0 %v633
      %v672 = vpop.f32.mrf.mxu0
      %v673 = vadd.f32 %v630, %v672
      %674 = vdwg.mxu0
      %675 = vmatpush.msra.mxu0 0.0
      %676 = vmatpush.msra.mxu0 0.0
      %677 = vmatpush.msra.mxu0 0.0
      %678 = vmatpush.msra.mxu0 0.0
      %679 = vmatpush.msra.mxu0 0.0
      %680 = vmatpush.msra.mxu0 0.0
      %681 = vmatpush.msra.mxu0 0.0
      %682 = vmatpush.msra.mxu0 0.0
      %683 = vmatpush.msra.mxu0 0.0
      %684 = vmatpush.msra.mxu0 0.0
      %685 = vmatpush.msra.mxu0 0.0
      %686 = vmatpush.msra.mxu0 0.0
      %687 = vmatpush.msra.mxu0 %v623
      %688 = vmatpush.msra.mxu0 %v619
      %689 = vmatpush.msra.mxu0 %v615
      %690 = vmatpush.msra.mxu0 %v611
      %691 = vmatmul.f32.gmra.mxu0 %v633
      %v692 = vpop.f32.mrf.mxu0
      %v693 = vadd.f32 %v630, %v692
      %694 = vdwg.mxu0
      %695 = vmatpush.msra.mxu0 0.0
      %696 = vmatpush.msra.mxu0 0.0
      %697 = vmatpush.msra.mxu0 0.0
      %698 = vmatpush.msra.mxu0 0.0
      %699 = vmatpush.msra.mxu0 0.0
      %700 = vmatpush.msra.mxu0 0.0
      %701 = vmatpush.msra.mxu0 0.0
      %702 = vmatpush.msra.mxu0 0.0
      %703 = vmatpush.msra.mxu0 0.0
      %704 = vmatpush.msra.mxu0 0.0
      %705 = vmatpush.msra.mxu0 0.0
      %706 = vmatpush.msra.mxu0 0.0
      %707 = vmatpush.msra.mxu0 %v624
      %708 = vmatpush.msra.mxu0 %v620
      %709 = vmatpush.msra.mxu0 %v616
      %710 = vmatpush.msra.mxu0 %v612
      %711 = vmatmul.f32.gmra.mxu0 %v633
      %v712 = vpop.f32.mrf.mxu0
      %v713 = vadd.f32 %v630, %v712
      %714 = vdwg.mxu0
      %v719 = vrot.slane %v673, 4
      %v720 = vrot.slane %v713, 4
      %vm721 = vcmask 1043456
      %v722 = vsel %vm721, %v653, %v719
      %v723 = vsel %vm721, %v693, %v720
      %726 = vst [vmem:[%s280] sm:$0x77] %v722
      %727 = vst [vmem:[%s280 + $0x8] sm:$0x77] %v723
      %s728 = smul.u32 4, %s18
      %p729 = scmp.lt.s32.totalorder %s728, 7
      %s730 = scalar_select %p729, %s728, 7
      %s731 = smul.addr %s730, 4
      %s732 = scalar_lea.vmem %s7, %s731
      // Predicated region
      $region49: #{relu_mlp_pallas.1} parent=47 // pred_check
        %p733 = pneg %p188
      $region50: #{relu_mlp_pallas.1} parent=47 // pred_check_branch
        %735 = sbr.rel (%p733) target = $region52
      $region51: #{relu_mlp_pallas.1} parent=47 // pred_region
        %s736 = smul.u32 4, %s18
      $region52: #{relu_mlp_pallas.1} parent=47 // pred_fallthru
        _
    $region48: #{relu_mlp_pallas.1} parent=5 // pred_fallthru
      _
    %p737 = scmp.le.s32.totalorder 2, %s13
    // Predicated region
    $region53: #{relu_mlp_pallas.1} parent=5 // pred_check
      %p738 = pneg %p737
    $region54: #{relu_mlp_pallas.1} parent=5 // pred_check_branch
      %740 = sbr.rel (%p738) target = $region56
    $region55: #{relu_mlp_pallas.1} parent=5 // pred_region
      %s741 = ssub.s32 %s13, 2
      // Predicated region
      $region57: #{relu_mlp_pallas.1} parent=55 // pred_check
        %p742 = pneg %p194
      $region58: #{relu_mlp_pallas.1} parent=55 // pred_check_branch
        %744 = sbr.rel (%p742) target = $region60
      $region59: #{relu_mlp_pallas.1} parent=55 // pred_region
        %s745 = smul.u32 4, %s19
        %p746 = scmp.lt.s32.totalorder %s745, 7
        %s747 = scalar_select %p746, %s745, 7
        %s748 = smul.addr %s747, 4
        %s749 = scalar_lea.vmem %s7, %s748
      $region60: #{relu_mlp_pallas.1} parent=55 // pred_fallthru
        _
    $region56: #{relu_mlp_pallas.1} parent=5 // pred_fallthru
      _
  $region6: #{relu_mlp_pallas.1} parent=0 // loop_footer
    %s17 = sadd.s32 1, %s13
  $region7: #{relu_mlp_pallas.1} parent=0 // loop_footer_branch
    %12 = sbr.rel target = $region3
  $region8: #{relu_mlp_pallas.1} parent=0 // loop_exit
    _

</llo_original>
